<compile_context>
chip_gen: v5e
topology: v5e:2x2
jax: 0.10.0
libtpu: 0.0.40
codegen_flags: <defaults>
</compile_context>

<pallas_src>
from functools import partial

import jax
import jax.numpy as jnp
from jax.experimental import pallas as pl
from jax.experimental.pallas import tpu as pltpu


def _smooth_l1(x, beta):
    ax = jnp.abs(x)
    return jnp.where(ax < beta, (0.5 / beta) * x * x, ax - 0.5 * beta)


def _consistency_kernel(params_ref,            # SMEM (scalar prefetch), (B*12,) f32
                        coord_ref, nocs_ref,   # VMEM (TB, 3, N), lane-dense over N
                        out_ref,               # VMEM (1, 1, TB) per-batch mean loss
                        *, tb, n, beta):
    g = pl.program_id(0)
    inv_ne = 1.0 / (3.0 * n)

    for j in range(tb):                         # static, fully unrolled
        base = (g * tb + j) * 12
        c = coord_ref[j]                        # (3, N) f32
        x = nocs_ref[j]                         # (3, N) f32

        # diff rows: (coord - t); one (1, N) vreg row each
        d0 = c[0:1, :] - params_ref[base + 9]
        d1 = c[1:2, :] - params_ref[base + 10]
        d2 = c[2:3, :] - params_ref[base + 11]

        # response rows: resp[d, :] = sum_e M[e, d] * diff[e, :],  M = R / s
        r0 = d0 * params_ref[base + 0] + d1 * params_ref[base + 3] + d2 * params_ref[base + 6]
        r1 = d0 * params_ref[base + 1] + d1 * params_ref[base + 4] + d2 * params_ref[base + 7]
        r2 = d0 * params_ref[base + 2] + d1 * params_ref[base + 5] + d2 * params_ref[base + 8]

        # smooth_l1(nocs, response, beta) summed over the 3 coords then over N
        elem = (_smooth_l1(x[0:1, :] - r0, beta)
                + _smooth_l1(x[1:2, :] - r1, beta)
                + _smooth_l1(x[2:3, :] - r2, beta))              # (1, N)
        loss_j = jnp.sum(elem, axis=1, keepdims=True) * inv_ne   # (1, 1) per-batch mean
        out_ref[0:1, 0:1, j:j + 1] = loss_j.reshape(1, 1, 1)


def _pick_tb(b, n, budget_bytes=1 << 20):
    """Largest divisor of b whose (TB, 3, N) f32 block stays under the budget."""
    per_batch_bytes = 3 * n * 4
    tb = int(max(1, min(b, budget_bytes // max(per_batch_bytes, 1))))
    while b % tb:
        tb -= 1
    return tb


def consistency_loss_pallas(coord, nocs, R, t, s, *, weight=1.0, eta=0.01):
    """coord, nocs: (B, N, 3); R: (B, 3, 3); t: (B, 3); s: (B,). Returns scalar."""
    B, N, D = coord.shape
    assert D == 3
    f32 = jnp.float32

    # Lane-dense layout: points along the 128-lane axis (cheap XLA transpose,
    # no zero padding, no mostly-zero HBM writes).
    coord_t = jnp.transpose(coord.astype(f32), (0, 2, 1))     # (B, 3, N)
    nocs_t = jnp.transpose(nocs.astype(f32), (0, 2, 1))       # (B, 3, N)

    # Per-batch transform scalars for SMEM: [M (9, row-major, M = R / s), t (3)].
    M = R.astype(f32) / s.astype(f32)[:, None, None]          # resp = (coord - t) @ M
    params = jnp.concatenate(
        [M.reshape(B, 9), t.astype(f32).reshape(B, 3)], axis=1).reshape(-1)  # (B*12,)

    TB = _pick_tb(B, N)
    G = B // TB
    kernel = partial(_consistency_kernel, tb=TB, n=N, beta=0.5)

    per_batch = pl.pallas_call(
        kernel,
        out_shape=jax.ShapeDtypeStruct((G, 1, TB), f32),
        grid_spec=pltpu.PrefetchScalarGridSpec(
            num_scalar_prefetch=1,              # params -> SMEM
            grid=(G,),
            in_specs=[
                pl.BlockSpec((TB, 3, N), lambda g, p: (g, 0, 0)),
                pl.BlockSpec((TB, 3, N), lambda g, p: (g, 0, 0)),
            ],
            out_specs=pl.BlockSpec((1, 1, TB), lambda g, p: (g, 0, 0)),
        ),
        compiler_params=pltpu.CompilerParams(
            dimension_semantics=("parallel",)),  # batch axis is embarrassingly parallel
    )(params, coord_t, nocs_t)

    loss = per_batch.reshape(B)                  # per-batch mean smooth-L1
    mask = loss > eta
    # TODO(synk): distributed all_reduce(valid) -> world_size == 1 here.
    valid = jnp.maximum(jnp.sum(mask.astype(f32)), 1.0)
    return weight * jnp.sum(jnp.where(mask, loss, 0.0)) / valid


def consistency_loss_ref(coord, nocs, R, t, s, *, weight=1.0, eta=0.01):
    """Pure-JAX reference mirroring the PyTorch forward (world_size = 1)."""
    beta = 0.5
    diff = coord - t[:, None, :]
    M = R / s[:, None, None]                     # response = diff @ (R / s)
    resp = jnp.einsum('bnd,bde->bne', diff, M)
    d = nocs - resp
    ad = jnp.abs(d)
    elem = jnp.where(ad < beta, 0.5 * d * d / beta, ad - 0.5 * beta)
    loss = elem.reshape(coord.shape[0], -1).mean(-1)
    mask = loss > eta
    valid = jnp.maximum(mask.astype(jnp.float32).sum(), 1.0)
    return weight * jnp.sum(jnp.where(mask, loss, 0.0)) / valid


if __name__ == "__main__":
    key = jax.random.PRNGKey(0)
    B, N = 2, 16
    k1, k2, k3, k4, k5 = jax.random.split(key, 5)

    coord = jax.random.normal(k1, (B, N, 3), dtype=jnp.float32)
    nocs = jax.random.uniform(k2, (B, N, 3), dtype=jnp.float32) - 0.5
    # deterministic rotation matrices via QR of random normals
    R = jnp.linalg.qr(jax.random.normal(k3, (B, 3, 3), dtype=jnp.float32))[0]
    t = 0.1 * jax.random.normal(k4, (B, 3), dtype=jnp.float32)
    s = jax.random.uniform(k5, (B,), dtype=jnp.float32, minval=0.5, maxval=1.5)

    weight, eta = 1.0, 0.01

    out = consistency_loss_pallas(coord, nocs, R, t, s, weight=weight, eta=eta)
    out = jax.block_until_ready(out)
    ref = consistency_loss_ref(coord, nocs, R, t, s, weight=weight, eta=eta)

    assert jnp.allclose(out, ref, rtol=1e-4, atol=1e-5), (out, ref)
    print("KERNEL_OK")
</pallas_src>

<mosaic_0001>
module attributes {stable_mosaic.version = 11 : i64} {
  func.func @_consistency_kernel(%arg0: i32, %arg1: memref<24xf32, #tpu.memory_space<smem>>, %arg2: memref<2x3x16xf32, #tpu.memory_space<vmem>>, %arg3: memref<2x3x16xf32, #tpu.memory_space<vmem>>, %arg4: memref<1x1x2xf32, #tpu.memory_space<vmem>>) attributes {dimension_semantics = [#tpu.dimension_semantics<parallel>], iteration_bounds = array<i64: 1>, scalar_prefetch = 1 : i64, scratch_operands = 0 : i64, tpu.core_type = #tpu.core_type<tc>, window_params = [{transform_indices = @transform_0, window_bounds = array<i64: 2, 3, 16>}, {transform_indices = @transform_1, window_bounds = array<i64: 2, 3, 16>}, {transform_indices = @transform_2, window_bounds = array<i64: 1, 1, 2>}]} {
    %c2_i32 = arith.constant 2 : i32
    %0 = arith.muli %arg0, %c2_i32 : i32
    %c0_i32 = arith.constant 0 : i32
    %1 = arith.addi %0, %c0_i32 : i32
    %c12_i32 = arith.constant 12 : i32
    %2 = arith.muli %1, %c12_i32 : i32
    %c0 = arith.constant 0 : index
    %c0_0 = arith.constant 0 : index
    %c0_1 = arith.constant 0 : index
    %3 = vector.load %arg2[%c0, %c0_0, %c0_1] : memref<2x3x16xf32, #tpu.memory_space<vmem>>, vector<1x3x16xf32>
    %4 = vector.shape_cast %3 : vector<1x3x16xf32> to vector<3x16xf32>
    %c0_2 = arith.constant 0 : index
    %c0_3 = arith.constant 0 : index
    %c0_4 = arith.constant 0 : index
    %5 = vector.load %arg3[%c0_2, %c0_3, %c0_4] : memref<2x3x16xf32, #tpu.memory_space<vmem>>, vector<1x3x16xf32>
    %6 = vector.shape_cast %5 : vector<1x3x16xf32> to vector<3x16xf32>
    %7 = vector.extract_strided_slice %4 {offsets = [0, 0], sizes = [1, 16], strides = [1, 1]} : vector<3x16xf32> to vector<1x16xf32>
    %c9_i32 = arith.constant 9 : i32
    %8 = arith.addi %2, %c9_i32 : i32
    %9 = arith.index_cast %8 : i32 to index
    %10 = memref.load %arg1[%9] : memref<24xf32, #tpu.memory_space<smem>>
    %11 = vector.broadcast %10 : f32 to vector<1x16xf32>
    %12 = arith.subf %7, %11 : vector<1x16xf32>
    %13 = vector.extract_strided_slice %4 {offsets = [1, 0], sizes = [1, 16], strides = [1, 1]} : vector<3x16xf32> to vector<1x16xf32>
    %c10_i32 = arith.constant 10 : i32
    %14 = arith.addi %2, %c10_i32 : i32
    %15 = arith.index_cast %14 : i32 to index
    %16 = memref.load %arg1[%15] : memref<24xf32, #tpu.memory_space<smem>>
    %17 = vector.broadcast %16 : f32 to vector<1x16xf32>
    %18 = arith.subf %13, %17 : vector<1x16xf32>
    %19 = vector.extract_strided_slice %4 {offsets = [2, 0], sizes = [1, 16], strides = [1, 1]} : vector<3x16xf32> to vector<1x16xf32>
    %c11_i32 = arith.constant 11 : i32
    %20 = arith.addi %2, %c11_i32 : i32
    %21 = arith.index_cast %20 : i32 to index
    %22 = memref.load %arg1[%21] : memref<24xf32, #tpu.memory_space<smem>>
    %23 = vector.broadcast %22 : f32 to vector<1x16xf32>
    %24 = arith.subf %19, %23 : vector<1x16xf32>
    %c0_i32_5 = arith.constant 0 : i32
    %25 = arith.addi %2, %c0_i32_5 : i32
    %26 = arith.index_cast %25 : i32 to index
    %27 = memref.load %arg1[%26] : memref<24xf32, #tpu.memory_space<smem>>
    %28 = vector.broadcast %27 : f32 to vector<1x16xf32>
    %29 = arith.mulf %12, %28 : vector<1x16xf32>
    %c3_i32 = arith.constant 3 : i32
    %30 = arith.addi %2, %c3_i32 : i32
    %31 = arith.index_cast %30 : i32 to index
    %32 = memref.load %arg1[%31] : memref<24xf32, #tpu.memory_space<smem>>
    %33 = vector.broadcast %32 : f32 to vector<1x16xf32>
    %34 = arith.mulf %18, %33 : vector<1x16xf32>
    %35 = arith.addf %29, %34 : vector<1x16xf32>
    %c6_i32 = arith.constant 6 : i32
    %36 = arith.addi %2, %c6_i32 : i32
    %37 = arith.index_cast %36 : i32 to index
    %38 = memref.load %arg1[%37] : memref<24xf32, #tpu.memory_space<smem>>
    %39 = vector.broadcast %38 : f32 to vector<1x16xf32>
    %40 = arith.mulf %24, %39 : vector<1x16xf32>
    %41 = arith.addf %35, %40 : vector<1x16xf32>
    %c1_i32 = arith.constant 1 : i32
    %42 = arith.addi %2, %c1_i32 : i32
    %43 = arith.index_cast %42 : i32 to index
    %44 = memref.load %arg1[%43] : memref<24xf32, #tpu.memory_space<smem>>
    %45 = vector.broadcast %44 : f32 to vector<1x16xf32>
    %46 = arith.mulf %12, %45 : vector<1x16xf32>
    %c4_i32 = arith.constant 4 : i32
    %47 = arith.addi %2, %c4_i32 : i32
    %48 = arith.index_cast %47 : i32 to index
    %49 = memref.load %arg1[%48] : memref<24xf32, #tpu.memory_space<smem>>
    %50 = vector.broadcast %49 : f32 to vector<1x16xf32>
    %51 = arith.mulf %18, %50 : vector<1x16xf32>
    %52 = arith.addf %46, %51 : vector<1x16xf32>
    %c7_i32 = arith.constant 7 : i32
    %53 = arith.addi %2, %c7_i32 : i32
    %54 = arith.index_cast %53 : i32 to index
    %55 = memref.load %arg1[%54] : memref<24xf32, #tpu.memory_space<smem>>
    %56 = vector.broadcast %55 : f32 to vector<1x16xf32>
    %57 = arith.mulf %24, %56 : vector<1x16xf32>
    %58 = arith.addf %52, %57 : vector<1x16xf32>
    %c2_i32_6 = arith.constant 2 : i32
    %59 = arith.addi %2, %c2_i32_6 : i32
    %60 = arith.index_cast %59 : i32 to index
    %61 = memref.load %arg1[%60] : memref<24xf32, #tpu.memory_space<smem>>
    %62 = vector.broadcast %61 : f32 to vector<1x16xf32>
    %63 = arith.mulf %12, %62 : vector<1x16xf32>
    %c5_i32 = arith.constant 5 : i32
    %64 = arith.addi %2, %c5_i32 : i32
    %65 = arith.index_cast %64 : i32 to index
    %66 = memref.load %arg1[%65] : memref<24xf32, #tpu.memory_space<smem>>
    %67 = vector.broadcast %66 : f32 to vector<1x16xf32>
    %68 = arith.mulf %18, %67 : vector<1x16xf32>
    %69 = arith.addf %63, %68 : vector<1x16xf32>
    %c8_i32 = arith.constant 8 : i32
    %70 = arith.addi %2, %c8_i32 : i32
    %71 = arith.index_cast %70 : i32 to index
    %72 = memref.load %arg1[%71] : memref<24xf32, #tpu.memory_space<smem>>
    %73 = vector.broadcast %72 : f32 to vector<1x16xf32>
    %74 = arith.mulf %24, %73 : vector<1x16xf32>
    %75 = arith.addf %69, %74 : vector<1x16xf32>
    %76 = vector.extract_strided_slice %6 {offsets = [0, 0], sizes = [1, 16], strides = [1, 1]} : vector<3x16xf32> to vector<1x16xf32>
    %77 = arith.subf %76, %41 : vector<1x16xf32>
    %78 = math.absf %77 : vector<1x16xf32>
    %cst = arith.constant 5.000000e-01 : f32
    %79 = vector.broadcast %cst : f32 to vector<1x16xf32>
    %80 = arith.cmpf olt, %78, %79 : vector<1x16xf32>
    %cst_7 = arith.constant 1.000000e+00 : f32
    %81 = vector.broadcast %cst_7 : f32 to vector<1x16xf32>
    %82 = arith.mulf %81, %77 : vector<1x16xf32>
    %83 = arith.mulf %82, %77 : vector<1x16xf32>
    %cst_8 = arith.constant 2.500000e-01 : f32
    %84 = vector.broadcast %cst_8 : f32 to vector<1x16xf32>
    %85 = arith.subf %78, %84 : vector<1x16xf32>
    %86 = arith.select %80, %83, %85 : vector<1x16xi1>, vector<1x16xf32>
    %87 = vector.extract_strided_slice %6 {offsets = [1, 0], sizes = [1, 16], strides = [1, 1]} : vector<3x16xf32> to vector<1x16xf32>
    %88 = arith.subf %87, %58 : vector<1x16xf32>
    %89 = math.absf %88 : vector<1x16xf32>
    %cst_9 = arith.constant 5.000000e-01 : f32
    %90 = vector.broadcast %cst_9 : f32 to vector<1x16xf32>
    %91 = arith.cmpf olt, %89, %90 : vector<1x16xf32>
    %cst_10 = arith.constant 1.000000e+00 : f32
    %92 = vector.broadcast %cst_10 : f32 to vector<1x16xf32>
    %93 = arith.mulf %92, %88 : vector<1x16xf32>
    %94 = arith.mulf %93, %88 : vector<1x16xf32>
    %cst_11 = arith.constant 2.500000e-01 : f32
    %95 = vector.broadcast %cst_11 : f32 to vector<1x16xf32>
    %96 = arith.subf %89, %95 : vector<1x16xf32>
    %97 = arith.select %91, %94, %96 : vector<1x16xi1>, vector<1x16xf32>
    %98 = arith.addf %86, %97 : vector<1x16xf32>
    %99 = vector.extract_strided_slice %6 {offsets = [2, 0], sizes = [1, 16], strides = [1, 1]} : vector<3x16xf32> to vector<1x16xf32>
    %100 = arith.subf %99, %75 : vector<1x16xf32>
    %101 = math.absf %100 : vector<1x16xf32>
    %cst_12 = arith.constant 5.000000e-01 : f32
    %102 = vector.broadcast %cst_12 : f32 to vector<1x16xf32>
    %103 = arith.cmpf olt, %101, %102 : vector<1x16xf32>
    %cst_13 = arith.constant 1.000000e+00 : f32
    %104 = vector.broadcast %cst_13 : f32 to vector<1x16xf32>
    %105 = arith.mulf %104, %100 : vector<1x16xf32>
    %106 = arith.mulf %105, %100 : vector<1x16xf32>
    %cst_14 = arith.constant 2.500000e-01 : f32
    %107 = vector.broadcast %cst_14 : f32 to vector<1x16xf32>
    %108 = arith.subf %101, %107 : vector<1x16xf32>
    %109 = arith.select %103, %106, %108 : vector<1x16xi1>, vector<1x16xf32>
    %110 = arith.addf %98, %109 : vector<1x16xf32>
    %cst_15 = arith.constant dense<0.000000e+00> : vector<1xf32>
    %111 = vector.multi_reduction <add>, %110, %cst_15 [1] : vector<1x16xf32> to vector<1xf32>
    %112 = vector.shape_cast %111 : vector<1xf32> to vector<1x1xf32>
    %cst_16 = arith.constant 0.020833334 : f32
    %113 = vector.broadcast %cst_16 : f32 to vector<1x1xf32>
    %114 = arith.mulf %112, %113 : vector<1x1xf32>
    %115 = vector.shape_cast %114 : vector<1x1xf32> to vector<1x1x1xf32>
    %c0_17 = arith.constant 0 : index
    %c0_18 = arith.constant 0 : index
    %c0_19 = arith.constant 0 : index
    %116 = vector.load %arg4[%c0_17, %c0_18, %c0_19] : memref<1x1x2xf32, #tpu.memory_space<vmem>>, vector<1x1x1xf32>
    tpu.vector_store %arg4[%c0_17, %c0_18, %c0_19], %115 {strides = array<i32>} : memref<1x1x2xf32, #tpu.memory_space<vmem>>, vector<1x1x1xf32>,
    %c2_i32_20 = arith.constant 2 : i32
    %117 = arith.muli %arg0, %c2_i32_20 : i32
    %c1_i32_21 = arith.constant 1 : i32
    %118 = arith.addi %117, %c1_i32_21 : i32
    %c12_i32_22 = arith.constant 12 : i32
    %119 = arith.muli %118, %c12_i32_22 : i32
    %c1 = arith.constant 1 : index
    %c0_23 = arith.constant 0 : index
    %c0_24 = arith.constant 0 : index
    %120 = vector.load %arg2[%c1, %c0_23, %c0_24] : memref<2x3x16xf32, #tpu.memory_space<vmem>>, vector<1x3x16xf32>
    %121 = vector.shape_cast %120 : vector<1x3x16xf32> to vector<3x16xf32>
    %c1_25 = arith.constant 1 : index
    %c0_26 = arith.constant 0 : index
    %c0_27 = arith.constant 0 : index
    %122 = vector.load %arg3[%c1_25, %c0_26, %c0_27] : memref<2x3x16xf32, #tpu.memory_space<vmem>>, vector<1x3x16xf32>
    %123 = vector.shape_cast %122 : vector<1x3x16xf32> to vector<3x16xf32>
    %124 = vector.extract_strided_slice %121 {offsets = [0, 0], sizes = [1, 16], strides = [1, 1]} : vector<3x16xf32> to vector<1x16xf32>
    %c9_i32_28 = arith.constant 9 : i32
    %125 = arith.addi %119, %c9_i32_28 : i32
    %126 = arith.index_cast %125 : i32 to index
    %127 = memref.load %arg1[%126] : memref<24xf32, #tpu.memory_space<smem>>
    %128 = vector.broadcast %127 : f32 to vector<1x16xf32>
    %129 = arith.subf %124, %128 : vector<1x16xf32>
    %130 = vector.extract_strided_slice %121 {offsets = [1, 0], sizes = [1, 16], strides = [1, 1]} : vector<3x16xf32> to vector<1x16xf32>
    %c10_i32_29 = arith.constant 10 : i32
    %131 = arith.addi %119, %c10_i32_29 : i32
    %132 = arith.index_cast %131 : i32 to index
    %133 = memref.load %arg1[%132] : memref<24xf32, #tpu.memory_space<smem>>
    %134 = vector.broadcast %133 : f32 to vector<1x16xf32>
    %135 = arith.subf %130, %134 : vector<1x16xf32>
    %136 = vector.extract_strided_slice %121 {offsets = [2, 0], sizes = [1, 16], strides = [1, 1]} : vector<3x16xf32> to vector<1x16xf32>
    %c11_i32_30 = arith.constant 11 : i32
    %137 = arith.addi %119, %c11_i32_30 : i32
    %138 = arith.index_cast %137 : i32 to index
    %139 = memref.load %arg1[%138] : memref<24xf32, #tpu.memory_space<smem>>
    %140 = vector.broadcast %139 : f32 to vector<1x16xf32>
    %141 = arith.subf %136, %140 : vector<1x16xf32>
    %c0_i32_31 = arith.constant 0 : i32
    %142 = arith.addi %119, %c0_i32_31 : i32
    %143 = arith.index_cast %142 : i32 to index
    %144 = memref.load %arg1[%143] : memref<24xf32, #tpu.memory_space<smem>>
    %145 = vector.broadcast %144 : f32 to vector<1x16xf32>
    %146 = arith.mulf %129, %145 : vector<1x16xf32>
    %c3_i32_32 = arith.constant 3 : i32
    %147 = arith.addi %119, %c3_i32_32 : i32
    %148 = arith.index_cast %147 : i32 to index
    %149 = memref.load %arg1[%148] : memref<24xf32, #tpu.memory_space<smem>>
    %150 = vector.broadcast %149 : f32 to vector<1x16xf32>
    %151 = arith.mulf %135, %150 : vector<1x16xf32>
    %152 = arith.addf %146, %151 : vector<1x16xf32>
    %c6_i32_33 = arith.constant 6 : i32
    %153 = arith.addi %119, %c6_i32_33 : i32
    %154 = arith.index_cast %153 : i32 to index
    %155 = memref.load %arg1[%154] : memref<24xf32, #tpu.memory_space<smem>>
    %156 = vector.broadcast %155 : f32 to vector<1x16xf32>
    %157 = arith.mulf %141, %156 : vector<1x16xf32>
    %158 = arith.addf %152, %157 : vector<1x16xf32>
    %c1_i32_34 = arith.constant 1 : i32
    %159 = arith.addi %119, %c1_i32_34 : i32
    %160 = arith.index_cast %159 : i32 to index
    %161 = memref.load %arg1[%160] : memref<24xf32, #tpu.memory_space<smem>>
    %162 = vector.broadcast %161 : f32 to vector<1x16xf32>
    %163 = arith.mulf %129, %162 : vector<1x16xf32>
    %c4_i32_35 = arith.constant 4 : i32
    %164 = arith.addi %119, %c4_i32_35 : i32
    %165 = arith.index_cast %164 : i32 to index
    %166 = memref.load %arg1[%165] : memref<24xf32, #tpu.memory_space<smem>>
    %167 = vector.broadcast %166 : f32 to vector<1x16xf32>
    %168 = arith.mulf %135, %167 : vector<1x16xf32>
    %169 = arith.addf %163, %168 : vector<1x16xf32>
    %c7_i32_36 = arith.constant 7 : i32
    %170 = arith.addi %119, %c7_i32_36 : i32
    %171 = arith.index_cast %170 : i32 to index
    %172 = memref.load %arg1[%171] : memref<24xf32, #tpu.memory_space<smem>>
    %173 = vector.broadcast %172 : f32 to vector<1x16xf32>
    %174 = arith.mulf %141, %173 : vector<1x16xf32>
    %175 = arith.addf %169, %174 : vector<1x16xf32>
    %c2_i32_37 = arith.constant 2 : i32
    %176 = arith.addi %119, %c2_i32_37 : i32
    %177 = arith.index_cast %176 : i32 to index
    %178 = memref.load %arg1[%177] : memref<24xf32, #tpu.memory_space<smem>>
    %179 = vector.broadcast %178 : f32 to vector<1x16xf32>
    %180 = arith.mulf %129, %179 : vector<1x16xf32>
    %c5_i32_38 = arith.constant 5 : i32
    %181 = arith.addi %119, %c5_i32_38 : i32
    %182 = arith.index_cast %181 : i32 to index
    %183 = memref.load %arg1[%182] : memref<24xf32, #tpu.memory_space<smem>>
    %184 = vector.broadcast %183 : f32 to vector<1x16xf32>
    %185 = arith.mulf %135, %184 : vector<1x16xf32>
    %186 = arith.addf %180, %185 : vector<1x16xf32>
    %c8_i32_39 = arith.constant 8 : i32
    %187 = arith.addi %119, %c8_i32_39 : i32
    %188 = arith.index_cast %187 : i32 to index
    %189 = memref.load %arg1[%188] : memref<24xf32, #tpu.memory_space<smem>>
    %190 = vector.broadcast %189 : f32 to vector<1x16xf32>
    %191 = arith.mulf %141, %190 : vector<1x16xf32>
    %192 = arith.addf %186, %191 : vector<1x16xf32>
    %193 = vector.extract_strided_slice %123 {offsets = [0, 0], sizes = [1, 16], strides = [1, 1]} : vector<3x16xf32> to vector<1x16xf32>
    %194 = arith.subf %193, %158 : vector<1x16xf32>
    %195 = math.absf %194 : vector<1x16xf32>
    %cst_40 = arith.constant 5.000000e-01 : f32
    %196 = vector.broadcast %cst_40 : f32 to vector<1x16xf32>
    %197 = arith.cmpf olt, %195, %196 : vector<1x16xf32>
    %cst_41 = arith.constant 1.000000e+00 : f32
    %198 = vector.broadcast %cst_41 : f32 to vector<1x16xf32>
    %199 = arith.mulf %198, %194 : vector<1x16xf32>
    %200 = arith.mulf %199, %194 : vector<1x16xf32>
    %cst_42 = arith.constant 2.500000e-01 : f32
    %201 = vector.broadcast %cst_42 : f32 to vector<1x16xf32>
    %202 = arith.subf %195, %201 : vector<1x16xf32>
    %203 = arith.select %197, %200, %202 : vector<1x16xi1>, vector<1x16xf32>
    %204 = vector.extract_strided_slice %123 {offsets = [1, 0], sizes = [1, 16], strides = [1, 1]} : vector<3x16xf32> to vector<1x16xf32>
    %205 = arith.subf %204, %175 : vector<1x16xf32>
    %206 = math.absf %205 : vector<1x16xf32>
    %cst_43 = arith.constant 5.000000e-01 : f32
    %207 = vector.broadcast %cst_43 : f32 to vector<1x16xf32>
    %208 = arith.cmpf olt, %206, %207 : vector<1x16xf32>
    %cst_44 = arith.constant 1.000000e+00 : f32
    %209 = vector.broadcast %cst_44 : f32 to vector<1x16xf32>
    %210 = arith.mulf %209, %205 : vector<1x16xf32>
    %211 = arith.mulf %210, %205 : vector<1x16xf32>
    %cst_45 = arith.constant 2.500000e-01 : f32
    %212 = vector.broadcast %cst_45 : f32 to vector<1x16xf32>
    %213 = arith.subf %206, %212 : vector<1x16xf32>
    %214 = arith.select %208, %211, %213 : vector<1x16xi1>, vector<1x16xf32>
    %215 = arith.addf %203, %214 : vector<1x16xf32>
    %216 = vector.extract_strided_slice %123 {offsets = [2, 0], sizes = [1, 16], strides = [1, 1]} : vector<3x16xf32> to vector<1x16xf32>
    %217 = arith.subf %216, %192 : vector<1x16xf32>
    %218 = math.absf %217 : vector<1x16xf32>
    %cst_46 = arith.constant 5.000000e-01 : f32
    %219 = vector.broadcast %cst_46 : f32 to vector<1x16xf32>
    %220 = arith.cmpf olt, %218, %219 : vector<1x16xf32>
    %cst_47 = arith.constant 1.000000e+00 : f32
    %221 = vector.broadcast %cst_47 : f32 to vector<1x16xf32>
    %222 = arith.mulf %221, %217 : vector<1x16xf32>
    %223 = arith.mulf %222, %217 : vector<1x16xf32>
    %cst_48 = arith.constant 2.500000e-01 : f32
    %224 = vector.broadcast %cst_48 : f32 to vector<1x16xf32>
    %225 = arith.subf %218, %224 : vector<1x16xf32>
    %226 = arith.select %220, %223, %225 : vector<1x16xi1>, vector<1x16xf32>
    %227 = arith.addf %215, %226 : vector<1x16xf32>
    %cst_49 = arith.constant dense<0.000000e+00> : vector<1xf32>
    %228 = vector.multi_reduction <add>, %227, %cst_49 [1] : vector<1x16xf32> to vector<1xf32>
    %229 = vector.shape_cast %228 : vector<1xf32> to vector<1x1xf32>
    %cst_50 = arith.constant 0.020833334 : f32
    %230 = vector.broadcast %cst_50 : f32 to vector<1x1xf32>
    %231 = arith.mulf %229, %230 : vector<1x1xf32>
    %232 = vector.shape_cast %231 : vector<1x1xf32> to vector<1x1x1xf32>
    %c0_51 = arith.constant 0 : index
    %c0_52 = arith.constant 0 : index
    %c1_53 = arith.constant 1 : index
    %233 = vector.load %arg4[%c0_51, %c0_52, %c1_53] : memref<1x1x2xf32, #tpu.memory_space<vmem>>, vector<1x1x1xf32>
    tpu.vector_store %arg4[%c0_51, %c0_52, %c1_53], %232 {strides = array<i32>} : memref<1x1x2xf32, #tpu.memory_space<vmem>>, vector<1x1x1xf32>,
    return
  }
  func.func @transform_0(%arg0: i32, %arg1: memref<24xf32, #tpu.memory_space<smem>>) -> (i32, i32, i32) {
    %c0_i32 = arith.constant 0 : i32
    %c0_i32_0 = arith.constant 0 : i32
    %c0_i32_1 = arith.constant 0 : i32
    return %arg0, %c0_i32, %c0_i32_0 : i32, i32, i32
  }
  func.func @transform_1(%arg0: i32, %arg1: memref<24xf32, #tpu.memory_space<smem>>) -> (i32, i32, i32) {
    %c0_i32 = arith.constant 0 : i32
    %c0_i32_0 = arith.constant 0 : i32
    %c0_i32_1 = arith.constant 0 : i32
    return %arg0, %c0_i32, %c0_i32_0 : i32, i32, i32
  }
  func.func @transform_2(%arg0: i32, %arg1: memref<24xf32, #tpu.memory_space<smem>>) -> (i32, i32, i32) {
    %c0_i32 = arith.constant 0 : i32
    %c0_i32_0 = arith.constant 0 : i32
    %c0_i32_1 = arith.constant 0 : i32
    return %arg0, %c0_i32, %c0_i32_0 : i32, i32, i32
  }
}

</mosaic_0001>

<llo_original>
// kernel: tpu_custom_call.1
$region0: #{tpu_custom_call.1}
  #allocation0 [shape = 'u32[]', space=smem, size = 0x4, offset = 0x4, fixed_abs, tag = 'smem constant byte address 0x4 - core index']
  #allocation1 [shape = 'u32[72,128]{1,0:T(1,128)}', space=vmem, size = 0x9000, scoped, tag = 'internal scratch']
  #allocation2 [shape = 's32[1]{0}', space=sflag, size = 0x4, scoped, tag = 'scoped memory for tpu_custom_call.1']
  #allocation3 [shape = 'u8[512]{0}', space=smem, size = 0x200, scoped, tag = 'prefetched SMEM operand 0']
  %s0 = inlined_call_operand.vmem [shape: f32[24], index: 0, kind: input, shape index: {}]
  %s1 = inlined_call_operand.vmem [shape: f32[2,3,16], index: 1, kind: input, shape index: {}]
  %s2 = inlined_call_operand.vmem [shape: f32[2,3,16], index: 2, kind: input, shape index: {}]
  %s3 = inlined_call_operand.hbm [shape: f32[1,1,2], index: 3, kind: output, shape index: {}]
  %s4 = sld [smem:[#allocation0]]
  $region18: #{tpu_custom_call.1} parent=0
    _
  %s6 = ssub.s32 1, %s4
  %s7 = scalar_select 0, %s6, %s4
  %s9 = sshll.u32 %s0, 4
  %s10 = int_to_ptr.vmem [resolvable:$true] %s9
  %12 = dma.vmem_to_smem %s10, 16, [#allocation3], [#allocation2]
  %14 = dma.done [#allocation2], 16
  %15 = sfence
  $region1: #{tpu_custom_call.1} parent=0
    #allocation4 [shape = 'u8[512]{0}', space=vmem, size = 0x400, scoped, tag = 'output window, operand 0, single buffered']
    #allocation5 [shape = 's32[1]{0}', space=sflag, size = 0x4, scoped, tag = 'scoped memory for tpu_custom_call.1']
    %16 = vsyncpa [#allocation5], 0
    // Predicated region
    $region2: #{tpu_custom_call.1} parent=1 // pred_check
      _
    $region3: #{tpu_custom_call.1} parent=1 // pred_check_branch
      %18 = sbr.rel (0) target = $region5
    $region4: #{tpu_custom_call.1} parent=1 // pred_region
      _
    $region5: #{tpu_custom_call.1} parent=1 // pred_fallthru
      _
    // Predicated region
    $region6: #{tpu_custom_call.1} parent=1 // pred_check
      _
    $region7: #{tpu_custom_call.1} parent=1 // pred_check_branch
      %20 = sbr.rel (0) target = $region9
    $region8: #{tpu_custom_call.1} parent=1 // pred_region
      _
    $region9: #{tpu_custom_call.1} parent=1 // pred_fallthru
      _
    %s21 = smul.u32 0, 24
    %v22 = vld [vmem:[%s1] sm:$0x7]
    %v23 = vld [vmem:[%s2] sm:$0x7]
    %s24 = sadd.s32 %s21, 9
    %s25 = sld [smem:[#allocation3 + %s24]]
    %v26 = vstv %s25
    %v27 = vsub.f32 %v22, %v26
    %s28 = sadd.s32 %s21, 10
    %s29 = sld [smem:[#allocation3 + %s28]]
    %v30 = vstv %s29
    %v31 = vsub.f32 %v22, %v30
    %s32 = sadd.s32 %s21, 11
    %s33 = sld [smem:[#allocation3 + %s32]]
    %v34 = vstv %s33
    %v35 = vsub.f32 %v22, %v34
    %s36 = sld [smem:[#allocation3 + %s21]]
    %v37 = vstv %s36
    %v38 = vmul.f32 %v27, %v37
    %s39 = sadd.s32 %s21, 3
    %s40 = sld [smem:[#allocation3 + %s39]]
    %v41 = vstv %s40
    %v42 = vmul.f32 %v31, %v41
    %v44 = vrot.slane %v42, 1
    %v46 = vadd.f32 %v38, %v44
    %s47 = sadd.s32 %s21, 6
    %s48 = sld [smem:[#allocation3 + %s47]]
    %v49 = vstv %s48
    %v50 = vmul.f32 %v35, %v49
    %v52 = vrot.slane %v50, 2
    %v54 = vadd.f32 %v46, %v52
    %s55 = sadd.s32 %s21, 1
    %s56 = sld [smem:[#allocation3 + %s55]]
    %v57 = vstv %s56
    %v58 = vmul.f32 %v27, %v57
    %s59 = sadd.s32 %s21, 4
    %s60 = sld [smem:[#allocation3 + %s59]]
    %v61 = vstv %s60
    %v62 = vmul.f32 %v31, %v61
    %v64 = vrot.slane %v62, 1
    %v66 = vadd.f32 %v58, %v64
    %s67 = sadd.s32 %s21, 7
    %s68 = sld [smem:[#allocation3 + %s67]]
    %v69 = vstv %s68
    %v70 = vmul.f32 %v35, %v69
    %v72 = vrot.slane %v70, 2
    %v74 = vadd.f32 %v66, %v72
    %s75 = sadd.s32 %s21, 2
    %s76 = sld [smem:[#allocation3 + %s75]]
    %v77 = vstv %s76
    %v78 = vmul.f32 %v27, %v77
    %s79 = sadd.s32 %s21, 5
    %s80 = sld [smem:[#allocation3 + %s79]]
    %v81 = vstv %s80
    %v82 = vmul.f32 %v31, %v81
    %v84 = vrot.slane %v82, 1
    %v86 = vadd.f32 %v78, %v84
    %s87 = sadd.s32 %s21, 8
    %s88 = sld [smem:[#allocation3 + %s87]]
    %v89 = vstv %s88
    %v90 = vmul.f32 %v35, %v89
    %v92 = vrot.slane %v90, 2
    %v94 = vadd.f32 %v86, %v92
    %v95 = vsub.f32 %v23, %v54
    %v96 = vand.u32 2147483647, %v95
    %vm97 = vcmp.lt.f32.partialorder %v96, 0.5
    %v98 = vmul.f32 %v95, %v95
    %v99 = vsub.f32 %v96, 0.25
    %v100 = vsel %vm97, %v98, %v99
    %v102 = vrot.slane %v74, 7
    %v104 = vsub.f32 %v23, %v102
    %v105 = vand.u32 2147483647, %v104
    %vm106 = vcmp.lt.f32.partialorder %v105, 0.5
    %v107 = vmul.f32 %v104, %v104
    %v108 = vsub.f32 %v105, 0.25
    %v109 = vsel %vm106, %v107, %v108
    %v111 = vrot.slane %v109, 1
    %v113 = vadd.f32 %v100, %v111
    %v115 = vrot.slane %v94, 6
    %v117 = vsub.f32 %v23, %v115
    %v118 = vand.u32 2147483647, %v117
    %vm119 = vcmp.lt.f32.partialorder %v118, 0.5
    %v120 = vmul.f32 %v117, %v117
    %v121 = vsub.f32 %v118, 0.25
    %v122 = vsel %vm119, %v120, %v121
    %v124 = vrot.slane %v122, 2
    %v126 = vadd.f32 %v113, %v124
    %vm127 = vcmask 122880
    %v128 = vsel %vm127, %v126, 0.0
    %129 = vadd.xlane.f32.xlu0 %v128
    %v130 = vpop.xlane.xlu0 %129
    %v131 = vmul.f32 %v130, 0.020833334
    %vm132 = vcmask 0
    %133 = vst.msk [vmem:[#allocation4] sm:$0x1] %vm132, %v131
    %s134 = smul.u32 0, 2
    %s135 = sadd.s32 %s134, 1
    %s136 = smul.u32 %s135, 12
    %s137 = scalar_lea.vmem %s1, 4
    %v138 = vld [vmem:[%s137] sm:$0x7]
    %s139 = scalar_lea.vmem %s2, 4
    %v140 = vld [vmem:[%s139] sm:$0x7]
    %s141 = sadd.s32 %s136, 9
    %s142 = sld [smem:[#allocation3 + %s141]]
    %v143 = vstv %s142
    %v144 = vsub.f32 %v138, %v143
    %s145 = sadd.s32 %s136, 10
    %s146 = sld [smem:[#allocation3 + %s145]]
    %v147 = vstv %s146
    %v148 = vsub.f32 %v138, %v147
    %s149 = sadd.s32 %s136, 11
    %s150 = sld [smem:[#allocation3 + %s149]]
    %v151 = vstv %s150
    %v152 = vsub.f32 %v138, %v151
    %s153 = sld [smem:[#allocation3 + %s136]]
    %v154 = vstv %s153
    %v155 = vmul.f32 %v144, %v154
    %s156 = sadd.s32 %s136, 3
    %s157 = sld [smem:[#allocation3 + %s156]]
    %v158 = vstv %s157
    %v159 = vmul.f32 %v148, %v158
    %v161 = vrot.slane %v159, 1
    %v163 = vadd.f32 %v155, %v161
    %s164 = sadd.s32 %s136, 6
    %s165 = sld [smem:[#allocation3 + %s164]]
    %v166 = vstv %s165
    %v167 = vmul.f32 %v152, %v166
    %v169 = vrot.slane %v167, 2
    %v171 = vadd.f32 %v163, %v169
    %s172 = sadd.s32 %s136, 1
    %s173 = sld [smem:[#allocation3 + %s172]]
    %v174 = vstv %s173
    %v175 = vmul.f32 %v144, %v174
    %s176 = sadd.s32 %s136, 4
    %s177 = sld [smem:[#allocation3 + %s176]]
    %v178 = vstv %s177
    %v179 = vmul.f32 %v148, %v178
    %v181 = vrot.slane %v179, 1
    %v183 = vadd.f32 %v175, %v181
    %s184 = sadd.s32 %s136, 7
    %s185 = sld [smem:[#allocation3 + %s184]]
    %v186 = vstv %s185
    %v187 = vmul.f32 %v152, %v186
    %v189 = vrot.slane %v187, 2
    %v191 = vadd.f32 %v183, %v189
    %s192 = sadd.s32 %s136, 2
    %s193 = sld [smem:[#allocation3 + %s192]]
    %v194 = vstv %s193
    %v195 = vmul.f32 %v144, %v194
    %s196 = sadd.s32 %s136, 5
    %s197 = sld [smem:[#allocation3 + %s196]]
    %v198 = vstv %s197
    %v199 = vmul.f32 %v148, %v198
    %v201 = vrot.slane %v199, 1
    %v203 = vadd.f32 %v195, %v201
    %s204 = sadd.s32 %s136, 8
    %s205 = sld [smem:[#allocation3 + %s204]]
    %v206 = vstv %s205
    %v207 = vmul.f32 %v152, %v206
    %v209 = vrot.slane %v207, 2
    %v211 = vadd.f32 %v203, %v209
    %v212 = vsub.f32 %v140, %v171
    %v213 = vand.u32 2147483647, %v212
    %vm214 = vcmp.lt.f32.partialorder %v213, 0.5
    %v215 = vmul.f32 %v212, %v212
    %v216 = vsub.f32 %v213, 0.25
    %v217 = vsel %vm214, %v215, %v216
    %v219 = vrot.slane %v191, 7
    %v221 = vsub.f32 %v140, %v219
    %v222 = vand.u32 2147483647, %v221
    %vm223 = vcmp.lt.f32.partialorder %v222, 0.5
    %v224 = vmul.f32 %v221, %v221
    %v225 = vsub.f32 %v222, 0.25
    %v226 = vsel %vm223, %v224, %v225
    %v228 = vrot.slane %v226, 1
    %v230 = vadd.f32 %v217, %v228
    %v232 = vrot.slane %v211, 6
    %v234 = vsub.f32 %v140, %v232
    %v235 = vand.u32 2147483647, %v234
    %vm236 = vcmp.lt.f32.partialorder %v235, 0.5
    %v237 = vmul.f32 %v234, %v234
    %v238 = vsub.f32 %v235, 0.25
    %v239 = vsel %vm236, %v237, %v238
    %v241 = vrot.slane %v239, 2
    %v243 = vadd.f32 %v230, %v241
    %v244 = vsel %vm127, %v243, 0.0
    %245 = vadd.xlane.f32.xlu0 %v244
    %v246 = vpop.xlane.xlu0 %245
    %v247 = vmul.f32 %v246, 0.020833334
    %vm248 = vcmask 8200
    %249 = vst.msk [vmem:[#allocation4] sm:$0x1] %vm248, %v247
    // Predicated region
    $region10: #{tpu_custom_call.1} parent=1 // pred_check
      _
    $region11: #{tpu_custom_call.1} parent=1 // pred_check_branch
      %251 = sbr.rel (0) target = $region13
    $region12: #{tpu_custom_call.1} parent=1 // pred_region
      %253 = vsyncadd [#allocation5], 0
      %s255 = sshll.u32 [#allocation4], 4
      %s256 = int_to_ptr.vmem [resolvable:$true] %s255
      %s257 = sshll.u32 %s3, 4
      %s258 = int_to_ptr.hbm [resolvable:$true] %s257
      %260 = dma.vmem_to_hbm [thread:$0]  %s256, 16, %s258, [#allocation5]
    $region13: #{tpu_custom_call.1} parent=1 // pred_fallthru
      _
    // Predicated region
    $region14: #{tpu_custom_call.1} parent=1 // pred_check
      _
    $region15: #{tpu_custom_call.1} parent=1 // pred_check_branch
      %262 = sbr.rel (0) target = $region17
    $region16: #{tpu_custom_call.1} parent=1 // pred_region
      %264 = dma.done [#allocation5], 16
    $region17: #{tpu_custom_call.1} parent=1 // pred_fallthru
      _
    %265 = vsyncpa [#allocation5], 1

</llo_original>
